<compile_context>
chip_gen: v6e
topology: v6e:2x2x1
jax: 0.10.0
libtpu: 0.0.40
codegen_flags: <defaults>
</compile_context>

<pallas_src>
import functools

import jax
import jax.numpy as jnp
from jax.experimental import pallas as pl
from jax.experimental.pallas import tpu as pltpu

EPS = 1e-5


def _vmem_budget():
    """Return (vmem_limit_bytes, is_big_vmem) gated on the chip's physical VMEM."""
    cap = None
    try:
        cap = getattr(pltpu.get_tpu_info(), "vmem_capacity_bytes", None)
    except Exception:  # unknown backend / query failure -> conservative default
        cap = None
    if cap is not None and cap >= (128 << 20):   # v5e / v6e: 128 MiB physical
        return 96 << 20, True
    return 32 << 20, False                        # v7x (64 MiB physical) / unknown


# -----------------------------------------------------------------------------
# Pass 1: direct conv (3 accumulating matmuls, kw folded into the contraction)
#         + per-tile per-channel sum / sum-of-squares (for global BN stats)
# -----------------------------------------------------------------------------
def _conv_stats_kernel(taps_ref, w_ref, y_ref, stats_ref, *, tile_m, wo_p):
    # taps_ref : (1, 2, (tile_ho+1)*Wo_p, K*Cin)  per-tile row-phase planes (+1 halo row)
    # w_ref    : (K, K*Cin, Cpad)                 resident for the whole grid
    # y_ref    : (tile_m, Cpad)                   conv output tile (pre-BN)
    # stats_ref: (1, 2, Cpad)                     this tile's [sum; sumsq]
    acc = jnp.dot(taps_ref[0, 0, pl.ds(0, tile_m), :], w_ref[0],
                  preferred_element_type=jnp.float32)          # kh = 0 (phase 0)
    acc = acc + jnp.dot(taps_ref[0, 1, pl.ds(0, tile_m), :], w_ref[1],
                        preferred_element_type=jnp.float32)    # kh = 1 (phase 1)
    acc = acc + jnp.dot(taps_ref[0, 0, pl.ds(wo_p, tile_m), :], w_ref[2],
                        preferred_element_type=jnp.float32)    # kh = 2 (phase 0, +1 row)

    y_ref[...] = acc.astype(y_ref.dtype)

    # Per-tile BN bookkeeping; reduced across tiles in the wrapper (keeps both
    # grid axes "parallel" for megacore sharding — no resident accumulator).
    stats_ref[0, 0:1, :] = jnp.sum(acc, axis=0, keepdims=True)
    stats_ref[0, 1:2, :] = jnp.sum(acc * acc, axis=0, keepdims=True)


# -----------------------------------------------------------------------------
# Pass 2: lane-dense normalize (folded gamma/beta) + ELU
# -----------------------------------------------------------------------------
def _bn_elu_kernel(y_ref, scale_ref, shift_ref, o_ref):
    z = y_ref[...].astype(jnp.float32) * scale_ref[...] + shift_ref[...]
    # ELU(alpha=1).  exp(min(z,0)) - 1 form kept for guaranteed Mosaic lowering.
    o_ref[...] = jnp.where(z > 0, z, jnp.exp(jnp.minimum(z, 0.0)) - 1.0
                           ).astype(o_ref.dtype)


def _pick_tile_ho(ho, wo_p, target_rows):
    """Largest divisor d of Ho with d*Wo_p <= target_rows (falls back to 1)."""
    best = 1
    for d in range(1, ho + 1):
        if ho % d == 0 and d * wo_p <= target_rows:
            best = d
    return best


def _pick_tile_m(m, target_rows):
    """Largest multiple-of-8 divisor of M that is <= target_rows (else M)."""
    best = None
    for d in range(8, min(m, target_rows) + 1, 8):
        if m % d == 0:
            best = d
    return best if best is not None else m


def convolution_block(x_nchw, conv_w, gamma, beta, *, eps=EPS,
                      compute_dtype=jnp.bfloat16, tile_rows=None):
    """ConvolutionBlock forward. x: (B, Cin, H, W) NCHW; conv_w: (Cout, Cin, 3, 3)."""
    B, Cin, H, W = x_nchw.shape
    Cout, Cin_w, K, K2 = conv_w.shape
    assert (Cin_w, K, K2) == (Cin, 3, 3), "specialized to the module's 3x3 conv"
    # TODO(synk): generalize the tap-plane decomposition to stride != 2 / k != 3.
    stride, padding = 2, 1
    Ho = (H + 2 * padding - K) // stride + 1
    Wo = (W + 2 * padding - K) // stride + 1
    Wo_p = max(8, ((Wo + 7) // 8) * 8)            # sublane-aligned row width
    Cpad = ((Cout + 127) // 128) * 128            # lane-dense output channels
    KC = K * Cin

    vmem_limit, big_vmem = _vmem_budget()
    if tile_rows is None:
        t1 = 512 if big_vmem else 256             # pass-1 row tile target
        t2 = 1024                                 # pass-2 row tile target
    else:
        t1 = t2 = tile_rows

    tile_ho = _pick_tile_ho(Ho, Wo_p, t1)
    n_t = Ho // tile_ho
    tile_m = tile_ho * Wo_p
    halo_rows = tile_m + Wo_p                     # (tile_ho + 1) * Wo_p

    # ---- wrapper-side layout plumbing (no im2col blowup) ---------------------
    x_nhwc = jnp.transpose(x_nchw, (0, 2, 3, 1)).astype(compute_dtype)
    Hp, Wp = 2 * Ho + 2, 2 * Wo + 2
    x_pad = jnp.pad(x_nhwc, ((0, 0), (padding, Hp - H - padding),
                             (padding, Wp - W - padding), (0, 0)))

    # Per-row-tile tap blocks: phase r in {0,1}, channels = concat over kw of Cin.
    # Block (b, t) phase r row i', col j, ch kw*Cin+c == x_pad[b, r+2*(t*tile_ho+i'), kw+2j, c]
    tiles = []
    for t in range(n_t):
        r0 = t * tile_ho
        phases = []
        for r in (0, 1):
            lo = r + 2 * r0
            cols = jnp.concatenate(
                [x_pad[:, lo:lo + 2 * (tile_ho + 1):2, kw:kw + 2 * Wo:2, :]
                 for kw in range(K)], axis=-1)                 # (B, tile_ho+1, Wo, KC)
            # Zero-pad the padded output columns so they contribute nothing to BN stats.
            cols = jnp.pad(cols, ((0, 0), (0, 0), (0, Wo_p - Wo), (0, 0)))
            phases.append(cols)
        tiles.append(jnp.stack(phases, axis=1))                # (B, 2, tile_ho+1, Wo_p, KC)
    taps = jnp.stack(tiles, axis=1)                            # (B, n_t, 2, tile_ho+1, Wo_p, KC)
    taps = taps.reshape(B * n_t, 2, halo_rows, KC)

    # Weights: (Cout, Cin, K, K) -> (K, K*Cin, Cpad); rows ordered (kw, cin).
    w_t = jnp.transpose(conv_w, (2, 3, 1, 0)).reshape(K, KC, Cout)
    w_p = jnp.pad(w_t, ((0, 0), (0, 0), (0, Cpad - Cout))).astype(compute_dtype)

    M_p = B * Ho * Wo_p

    # ---- pass 1: tiled conv GEMM + per-tile sum / sumsq ----------------------
    kernel1 = functools.partial(_conv_stats_kernel, tile_m=tile_m, wo_p=Wo_p)
    y, stats = pl.pallas_call(
        kernel1,
        grid_spec=pltpu.PrefetchScalarGridSpec(
            num_scalar_prefetch=0,
            grid=(B, n_t),
            in_specs=[
                # disjoint per-tile tap block (VMEM use is O(tile), not O(feature map))
                pl.BlockSpec((1, 2, halo_rows, KC), lambda b, t: (b * n_t + t, 0, 0, 0)),
                # weights resident for the whole grid
                pl.BlockSpec((K, KC, Cpad), lambda b, t: (0, 0, 0)),
            ],
            out_specs=[
                pl.BlockSpec((tile_m, Cpad), lambda b, t: (b * n_t + t, 0)),
                pl.BlockSpec((1, 2, Cpad), lambda b, t: (b * n_t + t, 0, 0)),
            ],
        ),
        out_shape=[
            jax.ShapeDtypeStruct((M_p, Cpad), compute_dtype),
            jax.ShapeDtypeStruct((B * n_t, 2, Cpad), jnp.float32),
        ],
        compiler_params=pltpu.CompilerParams(
            dimension_semantics=("parallel", "parallel"),
            vmem_limit_bytes=vmem_limit),
    )(taps, w_p)

    # ---- finalize global BN stats; fold gamma/beta/rsqrt into scale/shift ----
    tot = jnp.sum(stats, axis=0)                               # (2, Cpad)
    count = jnp.float32(B * Ho * Wo)                           # true element count
    mean = tot[0] / count
    var = jnp.maximum(tot[1] / count - mean * mean, 0.0)       # biased var (train BN)
    gamma_p = jnp.pad(gamma.astype(jnp.float32), (0, Cpad - Cout))
    beta_p = jnp.pad(beta.astype(jnp.float32), (0, Cpad - Cout))
    scale = (gamma_p * jax.lax.rsqrt(var + eps)).reshape(1, Cpad)
    shift = (beta_p - mean * scale[0]).reshape(1, Cpad)

    # ---- pass 2: lane-dense normalize + ELU, written in the input dtype ------
    out_dtype = x_nchw.dtype
    tile_m2 = _pick_tile_m(M_p, t2)
    out2d = pl.pallas_call(
        _bn_elu_kernel,
        grid_spec=pltpu.PrefetchScalarGridSpec(
            num_scalar_prefetch=0,
            grid=(M_p // tile_m2,),
            in_specs=[
                pl.BlockSpec((tile_m2, Cpad), lambda i: (i, 0)),
                pl.BlockSpec((1, Cpad), lambda i: (0, 0)),
                pl.BlockSpec((1, Cpad), lambda i: (0, 0)),
            ],
            out_specs=pl.BlockSpec((tile_m2, Cpad), lambda i: (i, 0)),
        ),
        out_shape=jax.ShapeDtypeStruct((M_p, Cpad), out_dtype),
        compiler_params=pltpu.CompilerParams(
            dimension_semantics=("parallel",),
            vmem_limit_bytes=vmem_limit),
    )(y, scale, shift)

    # Back to the PyTorch NCHW contract (only post-kernel layout op).
    out = out2d.reshape(B, Ho, Wo_p, Cpad)[:, :, :Wo, :Cout].transpose(0, 3, 1, 2)
    return out


def _reference(x_nchw, conv_w, gamma, beta, *, stride=2, padding=1, eps=EPS):
    """Plain-JAX reference (conv -> train-mode BN -> ELU)."""
    y = jax.lax.conv_general_dilated(
        x_nchw.astype(jnp.float32), conv_w.astype(jnp.float32),
        window_strides=(stride, stride),
        padding=((padding, padding), (padding, padding)),
        dimension_numbers=("NCHW", "OIHW", "NCHW"),
        precision=jax.lax.Precision.HIGHEST)
    mean = jnp.mean(y, axis=(0, 2, 3), keepdims=True)
    var = jnp.mean((y - mean) ** 2, axis=(0, 2, 3), keepdims=True)
    z = gamma.reshape(1, -1, 1, 1) * (y - mean) * jax.lax.rsqrt(var + eps) \
        + beta.reshape(1, -1, 1, 1)
    return jnp.where(z > 0, z, jnp.exp(jnp.minimum(z, 0.0)) - 1.0)


if __name__ == "__main__":
    key = jax.random.PRNGKey(0)
    k_x, k_w, k_g, k_b, k_x2, k_w2 = jax.random.split(key, 6)

    # ---- primary shape (even W: no column padding) --------------------------
    B, Cin, H, W = 2, 4, 16, 16
    Cout, K = 8, 3

    x = jax.random.normal(k_x, (B, Cin, H, W), dtype=jnp.float32)
    conv_w = 0.1 * jax.random.normal(k_w, (Cout, Cin, K, K), dtype=jnp.float32)
    gamma = 1.0 + 0.1 * jax.random.normal(k_g, (Cout,), dtype=jnp.float32)
    beta = 0.1 * jax.random.normal(k_b, (Cout,), dtype=jnp.float32)

    ref = jax.block_until_ready(_reference(x, conv_w, gamma, beta))

    # f32 compute path: tight check (tile_rows=32 only to exercise multi-tile).
    out_f32 = jax.block_until_ready(
        convolution_block(x, conv_w, gamma, beta,
                          compute_dtype=jnp.float32, tile_rows=32))
    assert out_f32.shape == (B, Cout, H // 2, W // 2), out_f32.shape
    if not jnp.allclose(out_f32, ref, atol=1e-3, rtol=1e-3):
        raise AssertionError(
            "f32 Pallas kernel does not match reference, max err = %s"
            % jnp.max(jnp.abs(out_f32 - ref)))

    # bf16 MXU path (v5e/v6e/v7x perf path): loose check.
    out_bf16 = jax.block_until_ready(
        convolution_block(x, conv_w, gamma, beta,
                          compute_dtype=jnp.bfloat16, tile_rows=32))
    assert out_bf16.shape == (B, Cout, H // 2, W // 2), out_bf16.shape
    if not jnp.allclose(out_bf16, ref, atol=1e-1, rtol=1e-1):
        raise AssertionError(
            "bf16 Pallas kernel deviates too much from reference, max err = %s"
            % jnp.max(jnp.abs(out_bf16 - ref)))

    # ---- secondary shape exercising Wo -> Wo_p column padding (Wo=6) --------
    B2, Cin2, H2, W2, Cout2 = 2, 3, 12, 12, 8
    x2 = jax.random.normal(k_x2, (B2, Cin2, H2, W2), dtype=jnp.float32)
    conv_w2 = 0.1 * jax.random.normal(k_w2, (Cout2, Cin2, K, K), dtype=jnp.float32)
    gamma2, beta2 = gamma[:Cout2], beta[:Cout2]

    ref2 = jax.block_until_ready(_reference(x2, conv_w2, gamma2, beta2))
    out2 = jax.block_until_ready(
        convolution_block(x2, conv_w2, gamma2, beta2,
                          compute_dtype=jnp.float32, tile_rows=32))
    assert out2.shape == ref2.shape, (out2.shape, ref2.shape)
    if not jnp.allclose(out2, ref2, atol=1e-3, rtol=1e-3):
        raise AssertionError(
            "f32 Pallas kernel (padded-Wo path) mismatch, max err = %s"
            % jnp.max(jnp.abs(out2 - ref2)))

    print("KERNEL_OK")
</pallas_src>

<mosaic_0001>
module attributes {stable_mosaic.version = 11 : i64} {
  func.func @_conv_stats_kernel(%arg0: i32, %arg1: i32, %arg2: memref<1x2x40x12xf32, #tpu.memory_space<vmem>>, %arg3: memref<3x12x128xf32, #tpu.memory_space<vmem>>, %arg4: memref<32x128xf32, #tpu.memory_space<vmem>>, %arg5: memref<1x2x128xf32, #tpu.memory_space<vmem>>) attributes {dimension_semantics = [#tpu.dimension_semantics<parallel>, #tpu.dimension_semantics<parallel>], iteration_bounds = array<i64: 2, 2>, scalar_prefetch = 0 : i64, scratch_operands = 0 : i64, tpu.core_type = #tpu.core_type<tc>, window_params = [{transform_indices = @transform_0, window_bounds = array<i64: 1, 2, 40, 12>}, {pipeline_mode = #tpu.pipeline_mode<synchronous>, transform_indices = @transform_1, window_bounds = array<i64: 3, 12, 128>}, {transform_indices = @transform_2, window_bounds = array<i64: 32, 128>}, {transform_indices = @transform_3, window_bounds = array<i64: 1, 2, 128>}]} {
    %c0 = arith.constant 0 : index
    %c0_0 = arith.constant 0 : index
    %c0_1 = arith.constant 0 : index
    %c0_2 = arith.constant 0 : index
    %0 = vector.load %arg2[%c0, %c0_0, %c0_1, %c0_2] : memref<1x2x40x12xf32, #tpu.memory_space<vmem>>, vector<1x1x32x12xf32>
    %1 = vector.shape_cast %0 : vector<1x1x32x12xf32> to vector<32x12xf32>
    %c0_3 = arith.constant 0 : index
    %c0_4 = arith.constant 0 : index
    %c0_5 = arith.constant 0 : index
    %2 = vector.load %arg3[%c0_3, %c0_4, %c0_5] : memref<3x12x128xf32, #tpu.memory_space<vmem>>, vector<1x12x128xf32>
    %3 = vector.shape_cast %2 : vector<1x12x128xf32> to vector<12x128xf32>
    %cst = arith.constant dense<0.000000e+00> : vector<32x128xf32>
    %4 = tpu.matmul %1, %3, %cst {dimension_numbers = #tpu.dot_dimension_numbers<[1], [0], [0], [1], [0, 0, 1, 1], [], []>} : vector<32x12xf32>, vector<12x128xf32>, vector<32x128xf32> -> vector<32x128xf32>
    %c0_6 = arith.constant 0 : index
    %c1 = arith.constant 1 : index
    %c0_7 = arith.constant 0 : index
    %c0_8 = arith.constant 0 : index
    %5 = vector.load %arg2[%c0_6, %c1, %c0_7, %c0_8] : memref<1x2x40x12xf32, #tpu.memory_space<vmem>>, vector<1x1x32x12xf32>
    %6 = vector.shape_cast %5 : vector<1x1x32x12xf32> to vector<32x12xf32>
    %c1_9 = arith.constant 1 : index
    %c0_10 = arith.constant 0 : index
    %c0_11 = arith.constant 0 : index
    %7 = vector.load %arg3[%c1_9, %c0_10, %c0_11] : memref<3x12x128xf32, #tpu.memory_space<vmem>>, vector<1x12x128xf32>
    %8 = vector.shape_cast %7 : vector<1x12x128xf32> to vector<12x128xf32>
    %cst_12 = arith.constant dense<0.000000e+00> : vector<32x128xf32>
    %9 = tpu.matmul %6, %8, %cst_12 {dimension_numbers = #tpu.dot_dimension_numbers<[1], [0], [0], [1], [0, 0, 1, 1], [], []>} : vector<32x12xf32>, vector<12x128xf32>, vector<32x128xf32> -> vector<32x128xf32>
    %10 = arith.addf %4, %9 : vector<32x128xf32>
    %c0_13 = arith.constant 0 : index
    %c0_14 = arith.constant 0 : index
    %c8 = arith.constant 8 : index
    %c0_15 = arith.constant 0 : index
    %11 = vector.load %arg2[%c0_13, %c0_14, %c8, %c0_15] : memref<1x2x40x12xf32, #tpu.memory_space<vmem>>, vector<1x1x32x12xf32>
    %12 = vector.shape_cast %11 : vector<1x1x32x12xf32> to vector<32x12xf32>
    %c2 = arith.constant 2 : index
    %c0_16 = arith.constant 0 : index
    %c0_17 = arith.constant 0 : index
    %13 = vector.load %arg3[%c2, %c0_16, %c0_17] : memref<3x12x128xf32, #tpu.memory_space<vmem>>, vector<1x12x128xf32>
    %14 = vector.shape_cast %13 : vector<1x12x128xf32> to vector<12x128xf32>
    %cst_18 = arith.constant dense<0.000000e+00> : vector<32x128xf32>
    %15 = tpu.matmul %12, %14, %cst_18 {dimension_numbers = #tpu.dot_dimension_numbers<[1], [0], [0], [1], [0, 0, 1, 1], [], []>} : vector<32x12xf32>, vector<12x128xf32>, vector<32x128xf32> -> vector<32x128xf32>
    %16 = arith.addf %10, %15 : vector<32x128xf32>
    %c0_19 = arith.constant 0 : index
    %c0_20 = arith.constant 0 : index
    %17 = vector.load %arg4[%c0_19, %c0_20] : memref<32x128xf32, #tpu.memory_space<vmem>>, vector<32x128xf32>
    tpu.vector_store %arg4[%c0_19, %c0_20], %16 {strides = array<i32>} : memref<32x128xf32, #tpu.memory_space<vmem>>, vector<32x128xf32>,
    %cst_21 = arith.constant dense<0.000000e+00> : vector<128xf32>
    %18 = vector.multi_reduction <add>, %16, %cst_21 [0] : vector<32x128xf32> to vector<128xf32>
    %19 = vector.shape_cast %18 : vector<128xf32> to vector<1x128xf32>
    %c0_22 = arith.constant 0 : index
    %c0_23 = arith.constant 0 : index
    %c0_24 = arith.constant 0 : index
    %20 = vector.load %arg5[%c0_22, %c0_23, %c0_24] : memref<1x2x128xf32, #tpu.memory_space<vmem>>, vector<1x1x128xf32>
    %21 = vector.shape_cast %20 : vector<1x1x128xf32> to vector<1x128xf32>
    %22 = vector.shape_cast %19 : vector<1x128xf32> to vector<1x1x128xf32>
    tpu.vector_store %arg5[%c0_22, %c0_23, %c0_24], %22 {strides = array<i32>} : memref<1x2x128xf32, #tpu.memory_space<vmem>>, vector<1x1x128xf32>,
    %23 = arith.mulf %16, %16 : vector<32x128xf32>
    %cst_25 = arith.constant dense<0.000000e+00> : vector<128xf32>
    %24 = vector.multi_reduction <add>, %23, %cst_25 [0] : vector<32x128xf32> to vector<128xf32>
    %25 = vector.shape_cast %24 : vector<128xf32> to vector<1x128xf32>
    %c0_26 = arith.constant 0 : index
    %c1_27 = arith.constant 1 : index
    %c0_28 = arith.constant 0 : index
    %26 = vector.load %arg5[%c0_26, %c1_27, %c0_28] : memref<1x2x128xf32, #tpu.memory_space<vmem>>, vector<1x1x128xf32>
    %27 = vector.shape_cast %26 : vector<1x1x128xf32> to vector<1x128xf32>
    %28 = vector.shape_cast %25 : vector<1x128xf32> to vector<1x1x128xf32>
    tpu.vector_store %arg5[%c0_26, %c1_27, %c0_28], %28 {strides = array<i32>} : memref<1x2x128xf32, #tpu.memory_space<vmem>>, vector<1x1x128xf32>,
    return
  }
  func.func @transform_0(%arg0: i32, %arg1: i32) -> (i32, i32, i32, i32) {
    %c2_i32 = arith.constant 2 : i32
    %0 = arith.muli %arg0, %c2_i32 : i32
    %1 = arith.addi %0, %arg1 : i32
    %c0_i32 = arith.constant 0 : i32
    %c0_i32_0 = arith.constant 0 : i32
    %c0_i32_1 = arith.constant 0 : i32
    %c0_i32_2 = arith.constant 0 : i32
    return %1, %c0_i32, %c0_i32_0, %c0_i32_1 : i32, i32, i32, i32
  }
  func.func @transform_1(%arg0: i32, %arg1: i32) -> (i32, i32, i32) {
    %c0_i32 = arith.constant 0 : i32
    %c0_i32_0 = arith.constant 0 : i32
    %c0_i32_1 = arith.constant 0 : i32
    %c0_i32_2 = arith.constant 0 : i32
    return %c0_i32, %c0_i32_0, %c0_i32_1 : i32, i32, i32
  }
  func.func @transform_2(%arg0: i32, %arg1: i32) -> (i32, i32) {
    %c2_i32 = arith.constant 2 : i32
    %0 = arith.muli %arg0, %c2_i32 : i32
    %1 = arith.addi %0, %arg1 : i32
    %c0_i32 = arith.constant 0 : i32
    %c0_i32_0 = arith.constant 0 : i32
    return %1, %c0_i32 : i32, i32
  }
  func.func @transform_3(%arg0: i32, %arg1: i32) -> (i32, i32, i32) {
    %c2_i32 = arith.constant 2 : i32
    %0 = arith.muli %arg0, %c2_i32 : i32
    %1 = arith.addi %0, %arg1 : i32
    %c0_i32 = arith.constant 0 : i32
    %c0_i32_0 = arith.constant 0 : i32
    %c0_i32_1 = arith.constant 0 : i32
    return %1, %c0_i32, %c0_i32_0 : i32, i32, i32
  }
}

</mosaic_0001>

<llo_original>
// kernel: tpu_custom_call.1
$region0: #{tpu_custom_call.1}
  #allocation0 [shape = 'u32[]', space=smem, size = 0x4, offset = 0x4, fixed_abs, tag = 'smem constant byte address 0x4 - core index']
  #allocation1 [shape = 'u32[144,128]{1,0:T(1,128)}', space=vmem, size = 0x12000, scoped, tag = 'internal scratch']
  %s0 = inlined_call_operand.vmem [shape: f32[4,2,40,12], index: 0, kind: input, shape index: {}]
  %s1 = inlined_call_operand.vmem [shape: f32[3,12,128], index: 1, kind: input, shape index: {}]
  %s2 = inlined_call_operand.hbm [shape: f32[128,128], index: 2, kind: output, shape index: {0}]
  %s3 = inlined_call_operand.hbm [shape: f32[4,2,128], index: 3, kind: output, shape index: {1}]
  %4 = xla_tuple %s2, %s3
  %s5 = sld [smem:[#allocation0]]
  $region49: #{tpu_custom_call.1} parent=0
    _
  %s7 = ssub.s32 1, %s5
  %s8 = scalar_select 0, %s7, %s5
  $region1: #{tpu_custom_call.1} parent=0
    #allocation2 [shape = 'u8[32768]{0}', space=vmem, size = 0x8000, scoped, tag = 'output window, operand 0']
    #allocation3 [shape = 's32[2]{0}', space=sflag, size = 0x8, scoped, tag = 'scoped memory for tpu_custom_call.1']
    #allocation4 [shape = 'u8[2048]{0}', space=vmem, size = 0x800, scoped, tag = 'output window, operand 1']
    #allocation5 [shape = 's32[2]{0}', space=sflag, size = 0x8, scoped, tag = 'scoped memory for tpu_custom_call.1']
    %9 = vsyncpa [#allocation3], 0
    %s10 = scalar_lea.sflag [#allocation3], 1
    %11 = vsyncpa %s10, 0
    %12 = vsyncpa [#allocation5], 0
    %s13 = scalar_lea.sflag [#allocation5], 1
    %14 = vsyncpa %s13, 0
    loop: start=0, step=1, limit=6
    $region2: #{tpu_custom_call.1} parent=1 // loop_pre_header
      _
    $region3: #{tpu_custom_call.1} parent=1 // loop_header
      %s16 = sphi 0, %s20
      %p17 = scmp.ge.s32.totalorder %s16, 6
      %s23 = sphi 0, %s35
      %s24 = sphi 0, %s31
      %s25 = sphi 0, %s23
      %s26 = sphi 0, %s24
      %s27 = sphi 0, %s25
      %s28 = sphi 0, %s26
      %s42 = sphi 0, %s44
      %s45 = sphi 0, %s42
      %s46 = sphi 0, %s45
      %s62 = sphi 0, %s46
      %s66 = sphi 0, %s66
      %s68 = sphi 0, %s66
      %s69 = sphi 0, %s68
      %s83 = sphi 0, %s69
      %s93 = sphi 0, %s95
      %s96 = sphi 0, %s93
      %s97 = sphi 0, %s96
      %s113 = sphi 0, %s97
      %s123 = sphi 0, %s125
      %s126 = sphi 0, %s123
      %s127 = sphi 0, %s126
      %s143 = sphi 0, %s127
    $region4: #{tpu_custom_call.1} parent=1 // loop_header_branch
      %19 = sbr.rel (%p17) target = $region8
    $region5: #{tpu_custom_call.1} parent=1 // loop_body
      %s21 = ssub.s32 %s16, 1
      %s22 = ssub.s32 %s16, 2
      %s29 = sadd.s32 1, %s24
      %p30 = scmp.ge.s32.totalorder %s29, 2
      %s31 = scalar_select %p30, 0, %s29
      %s32 = sadd.s32 1, %s23
      %s33 = scalar_select %p30, %s32, %s23
      %p34 = scmp.ge.s32.totalorder %s33, 2
      %s35 = scalar_select %p34, 0, %s33
      %s36 = smul.u32 %s23, 2
      %s37 = sadd.s32 %s36, %s24
      %s38 = smul.u32 %s35, 2
      %s39 = sadd.s32 %s38, %s31
      %s40 = ssub.s32 %s37, %s39
      %p41 = scmp.eq.s32.totalorder %s40, 0
      %s43 = sadd.s32 %s42, 1
      %s44 = scalar_select %p41, %s42, %s43
      %p47 = pneg %p41
      %p48 = scmp.eq.s32.totalorder %s16, 3
      %p49 = por %p47, %p48
      %p50 = scmp.ne.s32.totalorder %s42, %s45
      %p51 = scmp.eq.s32.totalorder %s16, 0
      %p52 = por %p50, %p51
      %p53 = scmp.ne.s32.totalorder %s42, %s45
      %p54 = scmp.eq.s32.totalorder %s21, 3
      %p55 = por %p53, %p54
      %p56 = scmp.ne.s32.totalorder %s45, %s46
      %p57 = scmp.eq.s32.totalorder %s21, 0
      %p58 = por %p56, %p57
      %p59 = scmp.ne.s32.totalorder %s45, %s46
      %p60 = scmp.eq.s32.totalorder %s22, 3
      %p61 = por %p59, %p60
      %p63 = scmp.ne.s32.totalorder %s46, %s62
      %p64 = scmp.eq.s32.totalorder %s22, 0
      %p65 = por %p63, %p64
      %s67 = sadd.s32 %s66, 1
      %p70 = scmp.eq.s32.totalorder %s16, 3
      %p71 = scmp.ne.s32.totalorder %s66, %s68
      %p72 = scmp.eq.s32.totalorder %s16, 0
      %p73 = por %p71, %p72
      %p74 = scmp.ne.s32.totalorder %s66, %s68
      %p75 = scmp.eq.s32.totalorder %s21, 3
      %p76 = por %p74, %p75
      %p77 = scmp.ne.s32.totalorder %s68, %s69
      %p78 = scmp.eq.s32.totalorder %s21, 0
      %p79 = por %p77, %p78
      %p80 = scmp.ne.s32.totalorder %s68, %s69
      %p81 = scmp.eq.s32.totalorder %s22, 3
      %p82 = por %p80, %p81
      %p84 = scmp.ne.s32.totalorder %s69, %s83
      %p85 = scmp.eq.s32.totalorder %s22, 0
      %p86 = por %p84, %p85
      %s87 = smul.u32 %s23, 2
      %s88 = sadd.s32 %s87, %s24
      %s89 = smul.u32 %s35, 2
      %s90 = sadd.s32 %s89, %s31
      %s91 = ssub.s32 %s88, %s90
      %p92 = scmp.eq.s32.totalorder %s91, 0
      %s94 = sadd.s32 %s93, 1
      %s95 = scalar_select %p92, %s93, %s94
      %p98 = pneg %p92
      %p99 = scmp.eq.s32.totalorder %s16, 3
      %p100 = por %p98, %p99
      %p101 = scmp.ne.s32.totalorder %s93, %s96
      %p102 = scmp.eq.s32.totalorder %s16, 0
      %p103 = por %p101, %p102
      %p104 = scmp.ne.s32.totalorder %s93, %s96
      %p105 = scmp.eq.s32.totalorder %s21, 3
      %p106 = por %p104, %p105
      %p107 = scmp.ne.s32.totalorder %s96, %s97
      %p108 = scmp.eq.s32.totalorder %s21, 0
      %p109 = por %p107, %p108
      %p110 = scmp.ne.s32.totalorder %s96, %s97
      %p111 = scmp.eq.s32.totalorder %s22, 3
      %p112 = por %p110, %p111
      %p114 = scmp.ne.s32.totalorder %s97, %s113
      %p115 = scmp.eq.s32.totalorder %s22, 0
      %p116 = por %p114, %p115
      %s117 = smul.u32 %s23, 2
      %s118 = sadd.s32 %s117, %s24
      %s119 = smul.u32 %s35, 2
      %s120 = sadd.s32 %s119, %s31
      %s121 = ssub.s32 %s118, %s120
      %p122 = scmp.eq.s32.totalorder %s121, 0
      %s124 = sadd.s32 %s123, 1
      %s125 = scalar_select %p122, %s123, %s124
      %p128 = pneg %p122
      %p129 = scmp.eq.s32.totalorder %s16, 3
      %p130 = por %p128, %p129
      %p131 = scmp.ne.s32.totalorder %s123, %s126
      %p132 = scmp.eq.s32.totalorder %s16, 0
      %p133 = por %p131, %p132
      %p134 = scmp.ne.s32.totalorder %s123, %s126
      %p135 = scmp.eq.s32.totalorder %s21, 3
      %p136 = por %p134, %p135
      %p137 = scmp.ne.s32.totalorder %s126, %s127
      %p138 = scmp.eq.s32.totalorder %s21, 0
      %p139 = por %p137, %p138
      %p140 = scmp.ne.s32.totalorder %s126, %s127
      %p141 = scmp.eq.s32.totalorder %s22, 3
      %p142 = por %p140, %p141
      %p144 = scmp.ne.s32.totalorder %s127, %s143
      %p145 = scmp.eq.s32.totalorder %s22, 0
      %p146 = por %p144, %p145
      %p147 = scmp.le.s32.totalorder 1, %s16
      %p148 = scmp.lt.s32.totalorder %s16, 5
      %p149 = pnand %p147, %p148
      %p150 = pneg %p149
      // Predicated region
      $region9: #{tpu_custom_call.1} parent=5 // pred_check
        _
      $region10: #{tpu_custom_call.1} parent=5 // pred_check_branch
        %152 = sbr.rel (%p149) target = $region12
      $region11: #{tpu_custom_call.1} parent=5 // pred_region
        %s153 = ssub.s32 %s16, 1
        // Predicated region
        $region13: #{tpu_custom_call.1} parent=11 // pred_check
          %p154 = pneg %p79
        $region14: #{tpu_custom_call.1} parent=11 // pred_check_branch
          %156 = sbr.rel (%p154) target = $region16
        $region15: #{tpu_custom_call.1} parent=11 // pred_region
          _
        $region16: #{tpu_custom_call.1} parent=11 // pred_fallthru
          _
      $region12: #{tpu_custom_call.1} parent=5 // pred_fallthru
        _
      %p157 = scmp.lt.s32.totalorder %s16, 4
      // Predicated region
      $region17: #{tpu_custom_call.1} parent=5 // pred_check
        %p158 = pneg %p157
      $region18: #{tpu_custom_call.1} parent=5 // pred_check_branch
        %160 = sbr.rel (%p158) target = $region20
      $region19: #{tpu_custom_call.1} parent=5 // pred_region
        // Predicated region
        $region21: #{tpu_custom_call.1} parent=19 // pred_check
          %p161 = pneg %p52
        $region22: #{tpu_custom_call.1} parent=19 // pred_check_branch
          %163 = sbr.rel (%p161) target = $region24
        $region23: #{tpu_custom_call.1} parent=19 // pred_region
          %s164 = smul.u32 %s23, 2
          %s165 = sadd.s32 %s164, %s24
          %p166 = scmp.lt.s32.totalorder %s165, 3
          %s167 = scalar_select %p166, %s165, 3
          %s168 = smul.addr %s167, 10
          %s169 = smul.addr %s168, 8
          %s170 = scalar_lea.vmem %s0, %s169
          %s171 = smul.u32 %s23, 2
          %s172 = sadd.s32 %s171, %s24
        $region24: #{tpu_custom_call.1} parent=19 // pred_fallthru
          _
      $region20: #{tpu_custom_call.1} parent=5 // pred_fallthru
        _
      %p173 = scmp.le.s32.totalorder 1, %s16
      %p174 = scmp.lt.s32.totalorder %s16, 5
      %p175 = pnand %p173, %p174
      %p176 = pneg %p175
      // Predicated region
      $region25: #{tpu_custom_call.1} parent=5 // pred_check
        _
      $region26: #{tpu_custom_call.1} parent=5 // pred_check_branch
        %178 = sbr.rel (%p175) target = $region28
      $region27: #{tpu_custom_call.1} parent=5 // pred_region
        %s179 = ssub.s32 %s16, 1
        %s180 = smul.u32 %s25, 2
        %s181 = sadd.s32 %s180, %s26
        %p182 = scmp.lt.s32.totalorder %s181, 3
        %s183 = scalar_select %p182, %s181, 3
        %s184 = smul.addr %s183, 10
        %s185 = smul.addr %s184, 8
        %s186 = scalar_lea.vmem %s0, %s185
        %p187 = pneg %p58
        %p188 = pneg %p55
        %p189 = pneg %p79
        %p190 = pneg %p76
        %p191 = pneg %p109
        %p192 = pneg %p106
        %s193 = sand.u32 %s96, 1
        %s194 = scalar_lea.sflag [#allocation3], %s193
        %s195 = sand.u32 %s96, 1
        %s196 = smul.addr %s195, 32
        %s197 = scalar_lea.vmem [#allocation2], %s196
        %p198 = pneg %p139
        %p199 = pneg %p136
        %s200 = sand.u32 %s126, 1
        %s201 = scalar_lea.sflag [#allocation5], %s200
        %s202 = sand.u32 %s126, 1
        %s203 = smul.addr %s202, 2
        %s204 = scalar_lea.vmem [#allocation4], %s203
        %s205 = smul.u32 %s25, 2
        %s206 = sadd.s32 %s205, %s26
        %p207 = scmp.lt.s32.totalorder %s206, 3
        %s208 = scalar_select %p207, %s206, 3
        %s209 = smul.addr %s208, 10
        %s210 = smul.addr %s209, 8
        %s211 = scalar_lea.vmem %s0, %s210
        %s212 = smul.u32 %s25, 2
        %s213 = sadd.s32 %s212, %s26
        %s214 = smul.u32 %s25, 2
        %s215 = sadd.s32 %s214, %s26
        %s216 = smul.u32 4, %s215
        %s217 = smul.u32 %s25, 2
        %s218 = sadd.s32 %s217, %s26
        %v219 = vld [vmem:[%s211] sm:$0xff]
        %v220 = vld [vmem:[%s211 + $0x8] sm:$0xff]
        %v221 = vld [vmem:[%s211 + $0x10] sm:$0xff]
        %v222 = vld [vmem:[%s211 + $0x18] sm:$0xff]
        %v223 = vld [vmem:[%s1] sm:$0xff]
        %v224 = vld [vmem:[%s1 + $0x8] sm:$0xf]
        %s225 = scalar_lea.vmem %s211, 40
        %v226 = vld [vmem:[%s225] sm:$0xff]
        %v227 = vld [vmem:[%s225 + $0x8] sm:$0xff]
        %v228 = vld [vmem:[%s225 + $0x10] sm:$0xff]
        %v229 = vld [vmem:[%s225 + $0x18] sm:$0xff]
        %s230 = scalar_lea.vmem %s1, 16
        %v231 = vld [vmem:[%s230] sm:$0xff]
        %v232 = vld [vmem:[%s230 + $0x8] sm:$0xf]
        %vm233 = vcmask 97280
        %v235 = vsel %vm233, %v226, 0
        %v238 = vsel %vm233, %v227, 0
        %v241 = vsel %vm233, %v228, 0
        %v244 = vsel %vm233, %v229, 0
        %vm246 = vcmask 1043456
        %v248 = vsel %vm246, %v232, 0
        %250 = vmatprep.subr.mxu0 0.0
        %251 = vmatpush1.msra.mxu0 0.0
        %252 = vmatprep.subr.mxu0 0.0
        %253 = vmatpush1.msra.mxu0 0.0
        %254 = vmatprep.subr.mxu0 0.0
        %255 = vmatpush1.msra.mxu0 0.0
        %256 = vmatprep.subr.mxu0 0.0
        %257 = vmatpush1.msra.mxu0 0.0
        %258 = vmatprep.subr.mxu0 0.0
        %259 = vmatpush1.msra.mxu0 0.0
        %260 = vmatprep.subr.mxu0 0.0
        %261 = vmatpush1.msra.mxu0 0.0
        %262 = vmatprep.subr.mxu0 0.0
        %263 = vmatpush1.msra.mxu0 0.0
        %264 = vmatprep.subr.mxu0 0.0
        %265 = vmatpush1.msra.mxu0 0.0
        %266 = vmatprep.subr.mxu0 0.0
        %267 = vmatpush1.msra.mxu0 0.0
        %268 = vmatprep.subr.mxu0 0.0
        %269 = vmatpush1.msra.mxu0 0.0
        %270 = vmatprep.subr.mxu0 0.0
        %271 = vmatpush1.msra.mxu0 0.0
        %272 = vmatprep.subr.mxu0 0.0
        %273 = vmatpush1.msra.mxu0 0.0
        %274 = vmatprep.subr.mxu0 0.0
        %275 = vmatpush1.msra.mxu0 0.0
        %276 = vmatprep.subr.mxu0 0.0
        %277 = vmatpush1.msra.mxu0 0.0
        %278 = vmatprep.subr.mxu0 0.0
        %279 = vmatpush1.msra.mxu0 %v248
        %280 = vmatprep.subr.mxu0 0.0
        %281 = vmatpush1.msra.mxu0 %v231
        %282 = vmatprep.subr.mxu0 0.0
        %283 = vmatpush2.msra.mxu0 0.0
        %284 = vmatprep.subr.mxu0 0.0
        %285 = vmatpush2.msra.mxu0 0.0
        %286 = vmatprep.subr.mxu0 0.0
        %287 = vmatpush2.msra.mxu0 0.0
        %288 = vmatprep.subr.mxu0 0.0
        %289 = vmatpush2.msra.mxu0 0.0
        %290 = vmatprep.subr.mxu0 0.0
        %291 = vmatpush2.msra.mxu0 0.0
        %292 = vmatprep.subr.mxu0 0.0
        %293 = vmatpush2.msra.mxu0 0.0
        %294 = vmatprep.subr.mxu0 0.0
        %295 = vmatpush2.msra.mxu0 0.0
        %296 = vmatprep.subr.mxu0 0.0
        %297 = vmatpush2.msra.mxu0 0.0
        %298 = vmatprep.subr.mxu0 0.0
        %299 = vmatpush2.msra.mxu0 0.0
        %300 = vmatprep.subr.mxu0 0.0
        %301 = vmatpush2.msra.mxu0 0.0
        %302 = vmatprep.subr.mxu0 0.0
        %303 = vmatpush2.msra.mxu0 0.0
        %304 = vmatprep.subr.mxu0 0.0
        %305 = vmatpush2.msra.mxu0 0.0
        %306 = vmatprep.subr.mxu0 0.0
        %307 = vmatpush2.msra.mxu0 0.0
        %308 = vmatprep.subr.mxu0 0.0
        %309 = vmatpush2.msra.mxu0 0.0
        %310 = vmatprep.subr.mxu0 0.0
        %311 = vmatpush2.msra.mxu0 0.0
        %312 = vmatprep.subr.mxu0 0.0
        %313 = vmatpush2.msra.mxu0 0.0
        %314 = vmatprep.mubr.f32.mxu0 0.0
        %315 = vmatmul.mubr.f32.gmra.mxu0 %v235
        %v316 = vpop.f32.mrf.mxu0
        %v317 = vadd.f32 0.0, %v316
        %v318 = vpop.f32.mrf.mxu0
        %319 = vmatprep.mubr.f32.mxu0 0.0
        %320 = vmatmul.mubr.f32.gmra.mxu0 %v238
        %v321 = vpop.f32.mrf.mxu0
        %v322 = vadd.f32 0.0, %v321
        %v323 = vpop.f32.mrf.mxu0
        %324 = vmatprep.mubr.f32.mxu0 0.0
        %325 = vmatmul.mubr.f32.gmra.mxu0 %v241
        %v326 = vpop.f32.mrf.mxu0
        %v327 = vadd.f32 0.0, %v326
        %v328 = vpop.f32.mrf.mxu0
        %329 = vmatprep.mubr.f32.mxu0 0.0
        %330 = vmatmul.mubr.f32.gmra.mxu0 %v244
        %v331 = vpop.f32.mrf.mxu0
        %v332 = vadd.f32 0.0, %v331
        %v333 = vpop.f32.mrf.mxu0
        %334 = vdwg.mxu0
        %v336 = vsel %vm233, %v219, 0
        %v339 = vsel %vm233, %v220, 0
        %v342 = vsel %vm233, %v221, 0
        %v345 = vsel %vm233, %v222, 0
        %v348 = vsel %vm246, %v224, 0
        %350 = vmatprep.subr.mxu0 0.0
        %351 = vmatpush1.msra.mxu0 0.0
        %352 = vmatprep.subr.mxu0 0.0
        %353 = vmatpush1.msra.mxu0 0.0
        %354 = vmatprep.subr.mxu0 0.0
        %355 = vmatpush1.msra.mxu0 0.0
        %356 = vmatprep.subr.mxu0 0.0
        %357 = vmatpush1.msra.mxu0 0.0
        %358 = vmatprep.subr.mxu0 0.0
        %359 = vmatpush1.msra.mxu0 0.0
        %360 = vmatprep.subr.mxu0 0.0
        %361 = vmatpush1.msra.mxu0 0.0
        %362 = vmatprep.subr.mxu0 0.0
        %363 = vmatpush1.msra.mxu0 0.0
        %364 = vmatprep.subr.mxu0 0.0
        %365 = vmatpush1.msra.mxu0 0.0
        %366 = vmatprep.subr.mxu0 0.0
        %367 = vmatpush1.msra.mxu0 0.0
        %368 = vmatprep.subr.mxu0 0.0
        %369 = vmatpush1.msra.mxu0 0.0
        %370 = vmatprep.subr.mxu0 0.0
        %371 = vmatpush1.msra.mxu0 0.0
        %372 = vmatprep.subr.mxu0 0.0
        %373 = vmatpush1.msra.mxu0 0.0
        %374 = vmatprep.subr.mxu0 0.0
        %375 = vmatpush1.msra.mxu0 0.0
        %376 = vmatprep.subr.mxu0 0.0
        %377 = vmatpush1.msra.mxu0 0.0
        %378 = vmatprep.subr.mxu0 0.0
        %379 = vmatpush1.msra.mxu0 %v348
        %380 = vmatprep.subr.mxu0 0.0
        %381 = vmatpush1.msra.mxu0 %v223
        %382 = vmatprep.subr.mxu0 0.0
        %383 = vmatpush2.msra.mxu0 0.0
        %384 = vmatprep.subr.mxu0 0.0
        %385 = vmatpush2.msra.mxu0 0.0
        %386 = vmatprep.subr.mxu0 0.0
        %387 = vmatpush2.msra.mxu0 0.0
        %388 = vmatprep.subr.mxu0 0.0
        %389 = vmatpush2.msra.mxu0 0.0
        %390 = vmatprep.subr.mxu0 0.0
        %391 = vmatpush2.msra.mxu0 0.0
        %392 = vmatprep.subr.mxu0 0.0
        %393 = vmatpush2.msra.mxu0 0.0
        %394 = vmatprep.subr.mxu0 0.0
        %395 = vmatpush2.msra.mxu0 0.0
        %396 = vmatprep.subr.mxu0 0.0
        %397 = vmatpush2.msra.mxu0 0.0
        %398 = vmatprep.subr.mxu0 0.0
        %399 = vmatpush2.msra.mxu0 0.0
        %400 = vmatprep.subr.mxu0 0.0
        %401 = vmatpush2.msra.mxu0 0.0
        %402 = vmatprep.subr.mxu0 0.0
        %403 = vmatpush2.msra.mxu0 0.0
        %404 = vmatprep.subr.mxu0 0.0
        %405 = vmatpush2.msra.mxu0 0.0
        %406 = vmatprep.subr.mxu0 0.0
        %407 = vmatpush2.msra.mxu0 0.0
        %408 = vmatprep.subr.mxu0 0.0
        %409 = vmatpush2.msra.mxu0 0.0
        %410 = vmatprep.subr.mxu0 0.0
        %411 = vmatpush2.msra.mxu0 0.0
        %412 = vmatprep.subr.mxu0 0.0
        %413 = vmatpush2.msra.mxu0 0.0
        %414 = vmatprep.mubr.f32.mxu0 0.0
        %415 = vmatmul.mubr.f32.gmra.mxu0 %v336
        %v416 = vpop.f32.mrf.mxu0
        %v417 = vadd.f32 %v317, %v416
        %v418 = vpop.f32.mrf.mxu0
        %419 = vmatprep.mubr.f32.mxu0 0.0
        %420 = vmatmul.mubr.f32.gmra.mxu0 %v339
        %v421 = vpop.f32.mrf.mxu0
        %v422 = vadd.f32 %v322, %v421
        %v423 = vpop.f32.mrf.mxu0
        %424 = vmatprep.mubr.f32.mxu0 0.0
        %425 = vmatmul.mubr.f32.gmra.mxu0 %v342
        %v426 = vpop.f32.mrf.mxu0
        %v427 = vadd.f32 %v327, %v426
        %v428 = vpop.f32.mrf.mxu0
        %429 = vmatprep.mubr.f32.mxu0 0.0
        %430 = vmatmul.mubr.f32.gmra.mxu0 %v345
        %v431 = vpop.f32.mrf.mxu0
        %v432 = vadd.f32 %v332, %v431
        %v433 = vpop.f32.mrf.mxu0
        %434 = vdwg.mxu0
        %v435 = vld [vmem:[%s211 + $0x8] sm:$0xff]
        %v436 = vld [vmem:[%s211 + $0x10] sm:$0xff]
        %v437 = vld [vmem:[%s211 + $0x18] sm:$0xff]
        %v438 = vld [vmem:[%s211 + $0x20] sm:$0xff]
        %s439 = scalar_lea.vmem %s1, 32
        %v440 = vld [vmem:[%s439] sm:$0xff]
        %v441 = vld [vmem:[%s439 + $0x8] sm:$0xf]
        %v443 = vsel %vm233, %v435, 0
        %v446 = vsel %vm233, %v436, 0
        %v449 = vsel %vm233, %v437, 0
        %v452 = vsel %vm233, %v438, 0
        %v455 = vsel %vm246, %v441, 0
        %457 = vmatprep.subr.mxu0 0.0
        %458 = vmatpush1.msra.mxu0 0.0
        %459 = vmatprep.subr.mxu0 0.0
        %460 = vmatpush1.msra.mxu0 0.0
        %461 = vmatprep.subr.mxu0 0.0
        %462 = vmatpush1.msra.mxu0 0.0
        %463 = vmatprep.subr.mxu0 0.0
        %464 = vmatpush1.msra.mxu0 0.0
        %465 = vmatprep.subr.mxu0 0.0
        %466 = vmatpush1.msra.mxu0 0.0
        %467 = vmatprep.subr.mxu0 0.0
        %468 = vmatpush1.msra.mxu0 0.0
        %469 = vmatprep.subr.mxu0 0.0
        %470 = vmatpush1.msra.mxu0 0.0
        %471 = vmatprep.subr.mxu0 0.0
        %472 = vmatpush1.msra.mxu0 0.0
        %473 = vmatprep.subr.mxu0 0.0
        %474 = vmatpush1.msra.mxu0 0.0
        %475 = vmatprep.subr.mxu0 0.0
        %476 = vmatpush1.msra.mxu0 0.0
        %477 = vmatprep.subr.mxu0 0.0
        %478 = vmatpush1.msra.mxu0 0.0
        %479 = vmatprep.subr.mxu0 0.0
        %480 = vmatpush1.msra.mxu0 0.0
        %481 = vmatprep.subr.mxu0 0.0
        %482 = vmatpush1.msra.mxu0 0.0
        %483 = vmatprep.subr.mxu0 0.0
        %484 = vmatpush1.msra.mxu0 0.0
        %485 = vmatprep.subr.mxu0 0.0
        %486 = vmatpush1.msra.mxu0 %v455
        %487 = vmatprep.subr.mxu0 0.0
        %488 = vmatpush1.msra.mxu0 %v440
        %489 = vmatprep.subr.mxu0 0.0
        %490 = vmatpush2.msra.mxu0 0.0
        %491 = vmatprep.subr.mxu0 0.0
        %492 = vmatpush2.msra.mxu0 0.0
        %493 = vmatprep.subr.mxu0 0.0
        %494 = vmatpush2.msra.mxu0 0.0
        %495 = vmatprep.subr.mxu0 0.0
        %496 = vmatpush2.msra.mxu0 0.0
        %497 = vmatprep.subr.mxu0 0.0
        %498 = vmatpush2.msra.mxu0 0.0
        %499 = vmatprep.subr.mxu0 0.0
        %500 = vmatpush2.msra.mxu0 0.0
        %501 = vmatprep.subr.mxu0 0.0
        %502 = vmatpush2.msra.mxu0 0.0
        %503 = vmatprep.subr.mxu0 0.0
        %504 = vmatpush2.msra.mxu0 0.0
        %505 = vmatprep.subr.mxu0 0.0
        %506 = vmatpush2.msra.mxu0 0.0
        %507 = vmatprep.subr.mxu0 0.0
        %508 = vmatpush2.msra.mxu0 0.0
        %509 = vmatprep.subr.mxu0 0.0
        %510 = vmatpush2.msra.mxu0 0.0
        %511 = vmatprep.subr.mxu0 0.0
        %512 = vmatpush2.msra.mxu0 0.0
        %513 = vmatprep.subr.mxu0 0.0
        %514 = vmatpush2.msra.mxu0 0.0
        %515 = vmatprep.subr.mxu0 0.0
        %516 = vmatpush2.msra.mxu0 0.0
        %517 = vmatprep.subr.mxu0 0.0
        %518 = vmatpush2.msra.mxu0 0.0
        %519 = vmatprep.subr.mxu0 0.0
        %520 = vmatpush2.msra.mxu0 0.0
        %521 = vmatprep.mubr.f32.mxu0 0.0
        %522 = vmatmul.mubr.f32.gmra.mxu0 %v443
        %v523 = vpop.f32.mrf.mxu0
        %v524 = vadd.f32 0.0, %v523
        %v525 = vpop.f32.mrf.mxu0
        %526 = vmatprep.mubr.f32.mxu0 0.0
        %527 = vmatmul.mubr.f32.gmra.mxu0 %v446
        %v528 = vpop.f32.mrf.mxu0
        %v529 = vadd.f32 0.0, %v528
        %v530 = vpop.f32.mrf.mxu0
        %531 = vmatprep.mubr.f32.mxu0 0.0
        %532 = vmatmul.mubr.f32.gmra.mxu0 %v449
        %v533 = vpop.f32.mrf.mxu0
        %v534 = vadd.f32 0.0, %v533
        %v535 = vpop.f32.mrf.mxu0
        %536 = vmatprep.mubr.f32.mxu0 0.0
        %537 = vmatmul.mubr.f32.gmra.mxu0 %v452
        %v538 = vpop.f32.mrf.mxu0
        %v539 = vadd.f32 0.0, %v538
        %v540 = vpop.f32.mrf.mxu0
        %541 = vdwg.mxu0
        %v542 = vadd.f32 %v417, %v524
        %v543 = vadd.f32 %v422, %v529
        %v544 = vadd.f32 %v427, %v534
        %v545 = vadd.f32 %v432, %v539
        %546 = vst [vmem:[%s197] sm:$0xff] %v542
        %547 = vst [vmem:[%s197 + $0x8] sm:$0xff] %v543
        %548 = vst [vmem:[%s197 + $0x10] sm:$0xff] %v544
        %549 = vst [vmem:[%s197 + $0x18] sm:$0xff] %v545
        %v550 = vadd.f32 %v542, %v543
        %v551 = vadd.f32 %v550, %v544
        %v552 = vadd.f32 %v551, %v545
        %v553 = vrot.slane %v552, 4
        %v554 = vadd.f32 %v552, %v553
        %v555 = vrot.slane %v554, 2
        %v556 = vadd.f32 %v554, %v555
        %v557 = vrot.slane %v556, 1
        %v558 = vadd.f32 %v556, %v557
        %559 = vst [vmem:[%s204] sm:$0x1] %v558
        %v560 = vmul.f32 %v542, %v542
        %v561 = vmul.f32 %v543, %v543
        %v562 = vmul.f32 %v544, %v544
        %v563 = vmul.f32 %v545, %v545
        %v564 = vadd.f32 %v560, %v561
        %v565 = vadd.f32 %v564, %v562
        %v566 = vadd.f32 %v565, %v563
        %v567 = vrot.slane %v566, 4
        %v568 = vadd.f32 %v566, %v567
        %v569 = vrot.slane %v568, 2
        %v570 = vadd.f32 %v568, %v569
        %v571 = vrot.slane %v570, 1
        %v572 = vadd.f32 %v570, %v571
        %573 = vst [vmem:[%s204 + $0x1] sm:$0x1] %v572
        %s574 = sand.u32 %s96, 1
        %s575 = scalar_lea.sflag [#allocation3], %s574
        %s576 = sand.u32 %s96, 1
        %s577 = smul.addr %s576, 32
        %s578 = scalar_lea.vmem [#allocation2], %s577
        %s579 = sand.u32 %s126, 1
        %s580 = scalar_lea.sflag [#allocation5], %s579
        %s581 = sand.u32 %s126, 1
        %s582 = smul.addr %s581, 2
        %s583 = scalar_lea.vmem [#allocation4], %s582
        // Predicated region
        $region29: #{tpu_custom_call.1} parent=27 // pred_check
          %p584 = pneg %p106
        $region30: #{tpu_custom_call.1} parent=27 // pred_check_branch
          %586 = sbr.rel (%p584) target = $region32
        $region31: #{tpu_custom_call.1} parent=27 // pred_region
          %s587 = smul.u32 %s25, 2
          %s588 = sadd.s32 %s587, %s26
          %s589 = smul.u32 4, %s588
          %s591 = ssub.s32 512, 512
          %592 = vsyncadd %s575, %s591
          %s593 = smul.addr %s589, 128
          %s594 = scalar_lea.hbm %s2, %s593
          %s595 = sshll.u32 %s578, 4
          %s596 = int_to_ptr.vmem [resolvable:$true] %s595
          %601 = dma.vmem_to_hbm [thread:$0]  %s596, 512, %s594, %s575, 128, 128, 8
        $region32: #{tpu_custom_call.1} parent=27 // pred_fallthru
          _
        // Predicated region
        $region33: #{tpu_custom_call.1} parent=27 // pred_check
          %p602 = pneg %p136
        $region34: #{tpu_custom_call.1} parent=27 // pred_check_branch
          %604 = sbr.rel (%p602) target = $region36
        $region35: #{tpu_custom_call.1} parent=27 // pred_region
          %s605 = smul.u32 %s25, 2
          %s606 = sadd.s32 %s605, %s26
          %s608 = ssub.s32 32, 32
          %609 = vsyncadd %s580, %s608
          %s610 = smul.addr %s606, 32
          %s611 = scalar_lea.hbm %s3, %s610
          %s613 = sshll.u32 %s583, 4
          %s614 = int_to_ptr.vmem [resolvable:$true] %s613
          %616 = dma.vmem_to_hbm [thread:$0]  %s614, 32, %s611, %s580
        $region36: #{tpu_custom_call.1} parent=27 // pred_fallthru
          _
      $region28: #{tpu_custom_call.1} parent=5 // pred_fallthru
        _
      %p617 = scmp.le.s32.totalorder 2, %s16
      // Predicated region
      $region37: #{tpu_custom_call.1} parent=5 // pred_check
        %p618 = pneg %p617
      $region38: #{tpu_custom_call.1} parent=5 // pred_check_branch
        %620 = sbr.rel (%p618) target = $region40
      $region39: #{tpu_custom_call.1} parent=5 // pred_region
        %s621 = ssub.s32 %s16, 2
        // Predicated region
        $region41: #{tpu_custom_call.1} parent=39 // pred_check
          %p622 = pneg %p112
        $region42: #{tpu_custom_call.1} parent=39 // pred_check_branch
          %624 = sbr.rel (%p622) target = $region44
        $region43: #{tpu_custom_call.1} parent=39 // pred_region
          %s625 = sand.u32 %s97, 1
          %s626 = scalar_lea.sflag [#allocation3], %s625
          %s627 = sand.u32 %s97, 1
          %s628 = smul.addr %s627, 32
          %s629 = scalar_lea.vmem [#allocation2], %s628
          %630 = dma.done %s626, 512
        $region44: #{tpu_custom_call.1} parent=39 // pred_fallthru
          _
        // Predicated region
        $region45: #{tpu_custom_call.1} parent=39 // pred_check
          %p631 = pneg %p142
        $region46: #{tpu_custom_call.1} parent=39 // pred_check_branch
          %633 = sbr.rel (%p631) target = $region48
        $region47: #{tpu_custom_call.1} parent=39 // pred_region
          %s634 = sand.u32 %s127, 1
          %s635 = scalar_lea.sflag [#allocation5], %s634
          %s636 = sand.u32 %s127, 1
          %s637 = smul.addr %s636, 2
          %s638 = scalar_lea.vmem [#allocation4], %s637
          %639 = dma.done %s635, 32
        $region48: #{tpu_custom_call.1} parent=39 // pred_fallthru
          _
      $region40: #{tpu_custom_call.1} parent=5 // pred_fallthru
        _
    $region6: #{tpu_custom_call.1} parent=1 // loop_footer
      %s20 = sadd.s32 1, %s16
    $region7: #{tpu_custom_call.1} parent=1 // loop_footer_branch
      %15 = sbr.rel target = $region3
    $region8: #{tpu_custom_call.1} parent=1 // loop_exit
      _
    %640 = vsyncpa [#allocation3], 1
    %s641 = scalar_lea.sflag [#allocation3], 1
    %642 = vsyncpa %s641, 1
    %643 = vsyncpa [#allocation5], 1
    %s644 = scalar_lea.sflag [#allocation5], 1
    %645 = vsyncpa %s644, 1

</llo_original>
